<compile_context>
chip_gen: v7x
topology: tpu7x:2x2x1
jax: 0.10.0
libtpu: 0.0.40
codegen_flags: <defaults>
</compile_context>

<pallas_src>
import functools

import numpy as np
import jax
import jax.numpy as jnp
from jax.experimental import pallas as pl
from jax.experimental.pallas import tpu as pltpu


# --------------------------------------------------------------------------
# Pallas kernel: softmax/sigmoid-focal class cost + L1 bbox cost + GIoU cost
# --------------------------------------------------------------------------
def _cost_matrix_kernel(logits_ref, boxes_ref, tgt_oh_ref, tgt_box_ref, out_ref,
                        *, cost_bbox_w, cost_giou_w,
                        focal_loss, focal_alpha, focal_gamma):
    logits = logits_ref[...].astype(jnp.float32)    # [TM, C]
    boxes = boxes_ref[...].astype(jnp.float32)      # [TM, 4] cxcywh
    tgt_oh = tgt_oh_ref[...]                        # [C, T] bf16, class weight folded in
    tgt_box = tgt_box_ref[...].astype(jnp.float32)  # [4, T] cxcywh (transposed)

    # ---------------- classification cost ----------------
    if focal_loss:
        prob = jax.nn.sigmoid(logits)
        one_m = 1.0 - prob
        if focal_gamma == 2.0:                      # avoid exp/log-based pow
            p_pow = prob * prob
            om_pow = one_m * one_m
        else:
            p_pow = prob ** focal_gamma
            om_pow = one_m ** focal_gamma
        neg = (1.0 - focal_alpha) * p_pow * (-jnp.log(one_m + 1e-8))
        pos = focal_alpha * om_pow * (-jnp.log(prob + 1e-8))
        cls_score = (pos - neg).astype(jnp.bfloat16)          # [TM, C]
    else:
        m = jnp.max(logits, axis=-1, keepdims=True)
        e = jnp.exp(logits - m)
        prob = e * pl.reciprocal(jnp.sum(e, axis=-1, keepdims=True), approx=False)
        cls_score = prob.astype(jnp.bfloat16)                  # [TM, C]

    # gather over target labels expressed as a (weighted) one-hot matmul (MXU)
    cost_class = jnp.dot(cls_score, tgt_oh, preferred_element_type=jnp.float32)

    # ---------------- box costs ----------------
    # predictions as [TM, 1] columns, targets as [1, T] rows -> broadcast [TM, T]
    pcx, pcy = boxes[:, 0:1], boxes[:, 1:2]
    pw, ph = boxes[:, 2:3], boxes[:, 3:4]
    tcx, tcy = tgt_box[0:1, :], tgt_box[1:2, :]
    tw, th = tgt_box[2:3, :], tgt_box[3:4, :]

    # L1 cdist on cxcywh coordinates
    cost_bbox = (jnp.abs(pcx - tcx) + jnp.abs(pcy - tcy)
                 + jnp.abs(pw - tw) + jnp.abs(ph - th))        # [TM, T]

    # GIoU on xyxy boxes
    px1, py1 = pcx - 0.5 * pw, pcy - 0.5 * ph
    px2, py2 = pcx + 0.5 * pw, pcy + 0.5 * ph
    tx1, ty1 = tcx - 0.5 * tw, tcy - 0.5 * th
    tx2, ty2 = tcx + 0.5 * tw, tcy + 0.5 * th

    area_p = pw * ph                                           # [TM, 1]
    area_t = tw * th                                           # [1, T]

    ix1 = jnp.maximum(px1, tx1)
    iy1 = jnp.maximum(py1, ty1)
    ix2 = jnp.minimum(px2, tx2)
    iy2 = jnp.minimum(py2, ty2)
    inter = jnp.maximum(ix2 - ix1, 0.0) * jnp.maximum(iy2 - iy1, 0.0)  # [TM, T]
    union = area_p + area_t - inter
    iou = inter * pl.reciprocal(union, approx=False)

    cx1 = jnp.minimum(px1, tx1)
    cy1 = jnp.minimum(py1, ty1)
    cx2 = jnp.maximum(px2, tx2)
    cy2 = jnp.maximum(py2, ty2)
    area_c = jnp.maximum(cx2 - cx1, 0.0) * jnp.maximum(cy2 - cy1, 0.0)
    # giou = iou - (area_c - union)/area_c  =>  -giou = 1 - iou - union/area_c
    cost_giou = 1.0 - iou - union * pl.reciprocal(area_c, approx=False)

    out_ref[...] = cost_bbox_w * cost_bbox + cost_class + cost_giou_w * cost_giou


def _round_up(x, m):
    return ((x + m - 1) // m) * m


def compute_cost_matrix(pred_logits, pred_boxes, tgt_labels, tgt_boxes,
                        *, cost_class=1.0, cost_bbox=1.0, cost_giou=1.0,
                        focal_loss=False, focal_alpha=0.25, focal_gamma=2.0,
                        block_m=256):
    """Returns cost matrix of shape [B, Q, T] (T = total number of targets)."""
    B, Q, C = pred_logits.shape
    N = B * Q
    T = int(tgt_labels.shape[0])
    if T == 0:  # no targets in the batch: nothing to match
        return jnp.zeros((B, Q, 0), jnp.float32)

    TM = min(int(block_m), _round_up(N, 8))        # rows per grid step
    N_pad = _round_up(N, TM)
    T_pad = _round_up(max(T, 128), 128)            # lane-dense output

    logits = pred_logits.reshape(N, C).astype(jnp.float32)
    boxes = pred_boxes.reshape(N, 4).astype(jnp.float32)
    if N_pad > N:
        logits = jnp.concatenate(
            [logits, jnp.zeros((N_pad - N, C), jnp.float32)], axis=0)
        pad_box = jnp.tile(jnp.array([[0.5, 0.5, 1.0, 1.0]], jnp.float32),
                           (N_pad - N, 1))
        boxes = jnp.concatenate([boxes, pad_box], axis=0)

    # fold the class weight (and softmax's negative sign) into the one-hot,
    # pad target columns with zeros / unit dummy boxes.
    class_scale = float(cost_class) if focal_loss else -float(cost_class)
    oh = jax.nn.one_hot(tgt_labels, C, dtype=jnp.float32) * class_scale  # [T, C]
    tgt_oh_t = (jnp.zeros((C, T_pad), jnp.float32)
                .at[:, :T].set(oh.T).astype(jnp.bfloat16))               # [C, T_pad]
    tgt_box_t = (jnp.tile(jnp.array([[0.5], [0.5], [1.0], [1.0]], jnp.float32),
                          (1, T_pad))
                 .at[:, :T].set(tgt_boxes.astype(jnp.float32).T))        # [4, T_pad]

    kernel = functools.partial(
        _cost_matrix_kernel,
        cost_bbox_w=float(cost_bbox), cost_giou_w=float(cost_giou),
        focal_loss=bool(focal_loss),
        focal_alpha=float(focal_alpha), focal_gamma=float(focal_gamma))

    grid = (N_pad // TM,)
    cost = pl.pallas_call(
        kernel,
        out_shape=jax.ShapeDtypeStruct((N_pad, T_pad), jnp.float32),
        grid_spec=pltpu.PrefetchScalarGridSpec(
            num_scalar_prefetch=0, grid=grid,
            in_specs=[pl.BlockSpec((TM, C), lambda i: (i, 0)),
                      pl.BlockSpec((TM, 4), lambda i: (i, 0)),
                      pl.BlockSpec((C, T_pad), lambda i: (0, 0)),
                      pl.BlockSpec((4, T_pad), lambda i: (0, 0))],
            out_specs=pl.BlockSpec((TM, T_pad), lambda i: (i, 0))),
        compiler_params=pltpu.CompilerParams(
            dimension_semantics=("parallel",)),
        cost_estimate=pl.CostEstimate(
            flops=2 * N_pad * C * T_pad + 40 * N_pad * T_pad,
            transcendentals=N_pad * C * (3 if focal_loss else 1),
            bytes_accessed=4 * (N_pad * C + N_pad * 4 + N_pad * T_pad)
                           + 2 * C * T_pad + 4 * 4 * T_pad),
    )(logits, boxes, tgt_oh_t, tgt_box_t)

    return cost[:N, :T].reshape(B, Q, T)


# --------------------------------------------------------------------------
# Host-side Hungarian (linear_sum_assignment) — sequential, no Pallas version.
# O(n^3) Kuhn-Munkres with potentials, handles rectangular matrices.
# --------------------------------------------------------------------------
def linear_sum_assignment_np(cost):
    cost = np.asarray(cost, dtype=np.float64)
    if cost.size == 0:
        return np.zeros((0,), dtype=np.int64), np.zeros((0,), dtype=np.int64)
    # clamp +inf (track-query masking) to a large finite value so an infeasible
    # row/column cannot corrupt the potentials.
    # TODO(synk): scipy raises on fully-infeasible matrices; here masked entries
    # are merely strongly discouraged via a large finite cost.
    cost = np.where(np.isposinf(cost), 1e15, cost)
    transposed = False
    if cost.shape[0] > cost.shape[1]:
        cost = cost.T
        transposed = True
    n, m = cost.shape  # n <= m
    INF = 1e18
    u = np.zeros(n + 1)
    v = np.zeros(m + 1)
    p = np.zeros(m + 1, dtype=np.int64)
    way = np.zeros(m + 1, dtype=np.int64)
    for i in range(1, n + 1):
        p[0] = i
        j0 = 0
        minv = np.full(m + 1, INF)
        used = np.zeros(m + 1, dtype=bool)
        while True:
            used[j0] = True
            i0 = p[j0]
            delta = INF
            j1 = -1
            for j in range(1, m + 1):
                if not used[j]:
                    cur = cost[i0 - 1, j - 1] - u[i0] - v[j]
                    if cur < minv[j]:
                        minv[j] = cur
                        way[j] = j0
                    if minv[j] < delta:
                        delta = minv[j]
                        j1 = j
            for j in range(m + 1):
                if used[j]:
                    u[p[j]] += delta
                    v[j] -= delta
                else:
                    minv[j] -= delta
            j0 = j1
            if p[j0] == 0:
                break
        while True:
            j1 = way[j0]
            p[j0] = p[j1]
            j0 = j1
            if j0 == 0:
                break
    rows, cols = [], []
    for j in range(1, m + 1):
        if p[j] != 0:
            rows.append(p[j] - 1)
            cols.append(j - 1)
    rows = np.asarray(rows, dtype=np.int64)
    cols = np.asarray(cols, dtype=np.int64)
    if transposed:
        rows, cols = cols, rows
    order = np.argsort(rows)
    return rows[order], cols[order]


# --------------------------------------------------------------------------
# Full matcher (Pallas cost matrix + host assignment)
# --------------------------------------------------------------------------
class HungarianMatcherPallas:
    def __init__(self, cost_class=1.0, cost_bbox=1.0, cost_giou=1.0,
                 focal_loss=False, focal_alpha=0.25, focal_gamma=2.0):
        self.cost_class = cost_class
        self.cost_bbox = cost_bbox
        self.cost_giou = cost_giou
        self.focal_loss = focal_loss
        self.focal_alpha = focal_alpha
        self.focal_gamma = focal_gamma

    def __call__(self, outputs, targets):
        pred_logits = outputs["pred_logits"]
        pred_boxes = outputs["pred_boxes"]
        B, Q, _ = pred_logits.shape

        sizes = [int(t["boxes"].shape[0]) for t in targets]
        T = sum(sizes)
        if T == 0:
            return [(np.zeros((0,), np.int64), np.zeros((0,), np.int64))
                    for _ in range(B)]

        tgt_ids = jnp.concatenate([t["labels"] for t in targets])
        tgt_bbox = jnp.concatenate([t["boxes"] for t in targets])

        cost = compute_cost_matrix(
            pred_logits, pred_boxes, tgt_ids, tgt_bbox,
            cost_class=self.cost_class, cost_bbox=self.cost_bbox,
            cost_giou=self.cost_giou, focal_loss=self.focal_loss,
            focal_alpha=self.focal_alpha, focal_gamma=self.focal_gamma)
        cost = jax.block_until_ready(cost)
        cost_np = np.array(cost, dtype=np.float64)  # writable copy, [B, Q, T]

        offsets = np.cumsum([0] + sizes)

        # Track-query masking (host-side glue, vectorized instead of a Python
        # per-element loop; mirrors the reference semantics).
        # TODO(synk): data-dependent np.inf masking stays on host, not in the kernel.
        for i, target in enumerate(targets):
            if "track_query_match_ids" not in target:
                continue
            fal_pos = np.asarray(target["track_queries_fal_pos_mask"], dtype=bool)
            tq_mask = np.asarray(target["track_queries_mask"], dtype=bool)
            match_ids = np.asarray(target["track_query_match_ids"], dtype=np.int64)
            track_rows = np.where(tq_mask & ~fal_pos)[0]
            k = min(len(track_rows), len(match_ids))
            track_rows = track_rows[:k]
            cols = match_ids[:k] + offsets[i]
            cost_np[i, fal_pos, :] = np.inf
            cost_np[i, track_rows, :] = np.inf
            cost_np[i, :, cols] = np.inf
            cost_np[i, track_rows, cols] = -1.0

        # Split by target sizes and solve assignment per batch element on host.
        results = []
        for i in range(B):
            c_i = cost_np[i, :, offsets[i]:offsets[i + 1]]
            row, col = linear_sum_assignment_np(c_i)
            results.append((row.astype(np.int64), col.astype(np.int64)))
        return results


# --------------------------------------------------------------------------
# Pure-numpy reference for the cost matrix (correctness check only).
# Simulates the kernel's bf16 rounding of the class scores.
# --------------------------------------------------------------------------
def _bf16_round(x):
    return np.asarray(jnp.asarray(x, jnp.float32)
                      .astype(jnp.bfloat16).astype(jnp.float32))


def _cost_matrix_ref(pred_logits, pred_boxes, tgt_ids, tgt_bbox, wc, wb, wg,
                     focal_loss=False, focal_alpha=0.25, focal_gamma=2.0):
    logits = np.asarray(pred_logits, np.float32).reshape(-1, pred_logits.shape[-1])
    boxes = np.asarray(pred_boxes, np.float32).reshape(-1, 4)
    tgt_ids = np.asarray(tgt_ids)
    tgt_bbox = np.asarray(tgt_bbox, np.float32)

    if focal_loss:
        prob = 1.0 / (1.0 + np.exp(-logits))
        neg = (1.0 - focal_alpha) * prob ** focal_gamma * -np.log(1.0 - prob + 1e-8)
        pos = focal_alpha * (1.0 - prob) ** focal_gamma * -np.log(prob + 1e-8)
        cls_score = _bf16_round(pos - neg)
        cost_class = cls_score[:, tgt_ids]
    else:
        e = np.exp(logits - logits.max(-1, keepdims=True))
        prob = e / e.sum(-1, keepdims=True)
        cost_class = -_bf16_round(prob)[:, tgt_ids]

    cost_bbox = np.abs(boxes[:, None, :] - tgt_bbox[None, :, :]).sum(-1)

    def to_xyxy(b):
        cx, cy, w, h = b[..., 0], b[..., 1], b[..., 2], b[..., 3]
        return np.stack([cx - w / 2, cy - h / 2, cx + w / 2, cy + h / 2], -1)

    b1, b2 = to_xyxy(boxes), to_xyxy(tgt_bbox)
    a1 = (b1[:, 2] - b1[:, 0]) * (b1[:, 3] - b1[:, 1])
    a2 = (b2[:, 2] - b2[:, 0]) * (b2[:, 3] - b2[:, 1])
    lt = np.maximum(b1[:, None, :2], b2[None, :, :2])
    rb = np.minimum(b1[:, None, 2:], b2[None, :, 2:])
    wh = np.clip(rb - lt, 0, None)
    inter = wh[..., 0] * wh[..., 1]
    union = a1[:, None] + a2[None, :] - inter
    iou = inter / union
    ltc = np.minimum(b1[:, None, :2], b2[None, :, :2])
    rbc = np.maximum(b1[:, None, 2:], b2[None, :, 2:])
    whc = np.clip(rbc - ltc, 0, None)
    areac = whc[..., 0] * whc[..., 1]
    giou = iou - (areac - union) / areac
    c = wb * cost_bbox + wc * cost_class + wg * (-giou)
    return c.reshape(pred_logits.shape[0], pred_logits.shape[1], -1)


if __name__ == "__main__":
    key = jax.random.PRNGKey(0)
    B, Q, C = 2, 8, 32
    sizes = [3, 2]

    k1, k2, k3, k4 = jax.random.split(key, 4)
    pred_logits = jax.random.normal(k1, (B, Q, C), dtype=jnp.float32)
    centers = jax.random.uniform(k2, (B, Q, 2), minval=0.25, maxval=0.75)
    whs = jax.random.uniform(k3, (B, Q, 2), minval=0.10, maxval=0.40)
    pred_boxes = jnp.concatenate([centers, whs], axis=-1)

    targets = []
    for i, s in enumerate(sizes):
        ki = jax.random.fold_in(k4, i)
        kl, kc, kw = jax.random.split(ki, 3)
        labels = jax.random.randint(kl, (s,), 0, C)
        c = jax.random.uniform(kc, (s, 2), minval=0.25, maxval=0.75)
        w = jax.random.uniform(kw, (s, 2), minval=0.10, maxval=0.40)
        targets.append({"labels": labels,
                        "boxes": jnp.concatenate([c, w], axis=-1)})

    tgt_ids = jnp.concatenate([t["labels"] for t in targets])
    tgt_bbox = jnp.concatenate([t["boxes"] for t in targets])

    # ---- check 1: box-only costs (f32 path), tight tolerance ----
    cost_box = jax.block_until_ready(compute_cost_matrix(
        pred_logits, pred_boxes, tgt_ids, tgt_bbox,
        cost_class=0.0, cost_bbox=1.0, cost_giou=1.0))
    ref_box = _cost_matrix_ref(pred_logits, pred_boxes, tgt_ids, tgt_bbox,
                               0.0, 1.0, 1.0)
    np.testing.assert_allclose(np.asarray(cost_box), ref_box, rtol=1e-4, atol=1e-4)

    # ---- check 2: full cost (softmax class path, bf16 MXU gather) ----
    cost = jax.block_until_ready(compute_cost_matrix(
        pred_logits, pred_boxes, tgt_ids, tgt_bbox,
        cost_class=1.0, cost_bbox=1.0, cost_giou=1.0))
    ref = _cost_matrix_ref(pred_logits, pred_boxes, tgt_ids, tgt_bbox,
                           1.0, 1.0, 1.0)
    np.testing.assert_allclose(np.asarray(cost), ref, rtol=1e-2, atol=1e-2)

    # ---- check 3: focal-loss class path ----
    cost_f = jax.block_until_ready(compute_cost_matrix(
        pred_logits, pred_boxes, tgt_ids, tgt_bbox,
        cost_class=1.0, cost_bbox=1.0, cost_giou=1.0,
        focal_loss=True, focal_alpha=0.25, focal_gamma=2.0))
    ref_f = _cost_matrix_ref(pred_logits, pred_boxes, tgt_ids, tgt_bbox,
                             1.0, 1.0, 1.0,
                             focal_loss=True, focal_alpha=0.25, focal_gamma=2.0)
    np.testing.assert_allclose(np.asarray(cost_f), ref_f, rtol=3e-2, atol=3e-2)

    # ---- end-to-end matcher (no track queries) ----
    matcher = HungarianMatcherPallas(cost_class=1.0, cost_bbox=1.0, cost_giou=1.0)
    outputs = {"pred_logits": pred_logits, "pred_boxes": pred_boxes}
    indices = matcher(outputs, targets)
    for (ri, ci), s in zip(indices, sizes):
        assert len(ri) == len(ci) == min(Q, s)

    # ---- end-to-end matcher with track-query masking on batch element 0 ----
    tq_mask = np.zeros((Q,), dtype=bool)
    tq_mask[1] = True     # real track query, must match target id 0
    tq_mask[2] = True     # false-positive track query
    fal_pos = np.zeros((Q,), dtype=bool)
    fal_pos[2] = True
    targets_tq = [dict(targets[0]), dict(targets[1])]
    targets_tq[0]["track_queries_mask"] = tq_mask
    targets_tq[0]["track_queries_fal_pos_mask"] = fal_pos
    targets_tq[0]["track_query_match_ids"] = np.array([0], dtype=np.int64)
    indices_tq = matcher(outputs, targets_tq)
    r0, c0 = indices_tq[0]
    assert len(r0) == len(c0) == min(Q, sizes[0])
    assert any(int(r) == 1 and int(c) == 0 for r, c in zip(r0, c0)), \
        "track query 1 must be forced onto target 0"

    print("KERNEL_OK")
</pallas_src>

<mosaic_0001>
module attributes {stable_mosaic.version = 11 : i64} {
  func.func @_cost_matrix_kernel(%arg0: i32, %arg1: memref<16x32xf32, #tpu.memory_space<vmem>>, %arg2: memref<16x4xf32, #tpu.memory_space<vmem>>, %arg3: memref<32x128xbf16, #tpu.memory_space<vmem>>, %arg4: memref<4x128xf32, #tpu.memory_space<vmem>>, %arg5: memref<16x128xf32, #tpu.memory_space<vmem>>) attributes {dimension_semantics = [#tpu.dimension_semantics<parallel>], iteration_bounds = array<i64: 1>, scalar_prefetch = 0 : i64, scratch_operands = 0 : i64, tpu.core_type = #tpu.core_type<tc>, window_params = [{transform_indices = @transform_0, window_bounds = array<i64: 16, 32>}, {transform_indices = @transform_1, window_bounds = array<i64: 16, 4>}, {pipeline_mode = #tpu.pipeline_mode<synchronous>, transform_indices = @transform_2, window_bounds = array<i64: 32, 128>}, {pipeline_mode = #tpu.pipeline_mode<synchronous>, transform_indices = @transform_3, window_bounds = array<i64: 4, 128>}, {transform_indices = @transform_4, window_bounds = array<i64: 16, 128>}]} {
    %c0 = arith.constant 0 : index
    %c0_0 = arith.constant 0 : index
    %0 = vector.load %arg1[%c0, %c0_0] : memref<16x32xf32, #tpu.memory_space<vmem>>, vector<16x32xf32>
    %c0_1 = arith.constant 0 : index
    %c0_2 = arith.constant 0 : index
    %1 = vector.load %arg2[%c0_1, %c0_2] : memref<16x4xf32, #tpu.memory_space<vmem>>, vector<16x4xf32>
    %c0_3 = arith.constant 0 : index
    %c0_4 = arith.constant 0 : index
    %2 = vector.load %arg3[%c0_3, %c0_4] : memref<32x128xbf16, #tpu.memory_space<vmem>>, vector<32x128xbf16>
    %c0_5 = arith.constant 0 : index
    %c0_6 = arith.constant 0 : index
    %3 = vector.load %arg4[%c0_5, %c0_6] : memref<4x128xf32, #tpu.memory_space<vmem>>, vector<4x128xf32>
    %cst = arith.constant dense<0xFF800000> : vector<16xf32>
    %4 = vector.multi_reduction <maximumf>, %0, %cst [1] : vector<16x32xf32> to vector<16xf32>
    %5 = vector.shape_cast %4 : vector<16xf32> to vector<16x1xf32>
    %6 = vector.broadcast %5 : vector<16x1xf32> to vector<16x32xf32>
    %7 = arith.subf %0, %6 : vector<16x32xf32>
    %8 = math.exp %7 : vector<16x32xf32>
    %cst_7 = arith.constant dense<0.000000e+00> : vector<16xf32>
    %9 = vector.multi_reduction <add>, %8, %cst_7 [1] : vector<16x32xf32> to vector<16xf32>
    %10 = vector.shape_cast %9 : vector<16xf32> to vector<16x1xf32>
    %11 = tpu.reciprocal %10 : vector<16x1xf32> -> vector<16x1xf32>
    %12 = vector.broadcast %11 : vector<16x1xf32> to vector<16x32xf32>
    %13 = arith.mulf %8, %12 : vector<16x32xf32>
    %14 = arith.truncf %13 : vector<16x32xf32> to vector<16x32xbf16>
    %cst_8 = arith.constant dense<0.000000e+00> : vector<16x128xf32>
    %15 = tpu.matmul %14, %2, %cst_8 {dimension_numbers = #tpu.dot_dimension_numbers<[1], [0], [0], [1], [0, 0, 1, 1], [], []>} : vector<16x32xbf16>, vector<32x128xbf16>, vector<16x128xf32> -> vector<16x128xf32>
    %16 = vector.extract_strided_slice %1 {offsets = [0, 0], sizes = [16, 1], strides = [1, 1]} : vector<16x4xf32> to vector<16x1xf32>
    %17 = vector.extract_strided_slice %1 {offsets = [0, 1], sizes = [16, 1], strides = [1, 1]} : vector<16x4xf32> to vector<16x1xf32>
    %18 = vector.extract_strided_slice %1 {offsets = [0, 2], sizes = [16, 1], strides = [1, 1]} : vector<16x4xf32> to vector<16x1xf32>
    %19 = vector.extract_strided_slice %1 {offsets = [0, 3], sizes = [16, 1], strides = [1, 1]} : vector<16x4xf32> to vector<16x1xf32>
    %20 = vector.extract_strided_slice %3 {offsets = [0, 0], sizes = [1, 128], strides = [1, 1]} : vector<4x128xf32> to vector<1x128xf32>
    %21 = vector.extract_strided_slice %3 {offsets = [1, 0], sizes = [1, 128], strides = [1, 1]} : vector<4x128xf32> to vector<1x128xf32>
    %22 = vector.extract_strided_slice %3 {offsets = [2, 0], sizes = [1, 128], strides = [1, 1]} : vector<4x128xf32> to vector<1x128xf32>
    %23 = vector.extract_strided_slice %3 {offsets = [3, 0], sizes = [1, 128], strides = [1, 1]} : vector<4x128xf32> to vector<1x128xf32>
    %24 = vector.broadcast %16 : vector<16x1xf32> to vector<16x128xf32>
    %25 = vector.broadcast %20 : vector<1x128xf32> to vector<16x128xf32>
    %26 = arith.subf %24, %25 : vector<16x128xf32>
    %27 = math.absf %26 : vector<16x128xf32>
    %28 = vector.broadcast %17 : vector<16x1xf32> to vector<16x128xf32>
    %29 = vector.broadcast %21 : vector<1x128xf32> to vector<16x128xf32>
    %30 = arith.subf %28, %29 : vector<16x128xf32>
    %31 = math.absf %30 : vector<16x128xf32>
    %32 = arith.addf %27, %31 : vector<16x128xf32>
    %33 = vector.broadcast %18 : vector<16x1xf32> to vector<16x128xf32>
    %34 = vector.broadcast %22 : vector<1x128xf32> to vector<16x128xf32>
    %35 = arith.subf %33, %34 : vector<16x128xf32>
    %36 = math.absf %35 : vector<16x128xf32>
    %37 = arith.addf %32, %36 : vector<16x128xf32>
    %38 = vector.broadcast %19 : vector<16x1xf32> to vector<16x128xf32>
    %39 = vector.broadcast %23 : vector<1x128xf32> to vector<16x128xf32>
    %40 = arith.subf %38, %39 : vector<16x128xf32>
    %41 = math.absf %40 : vector<16x128xf32>
    %42 = arith.addf %37, %41 : vector<16x128xf32>
    %cst_9 = arith.constant 5.000000e-01 : f32
    %43 = vector.broadcast %cst_9 : f32 to vector<16x1xf32>
    %44 = arith.mulf %43, %18 : vector<16x1xf32>
    %45 = arith.subf %16, %44 : vector<16x1xf32>
    %cst_10 = arith.constant 5.000000e-01 : f32
    %46 = vector.broadcast %cst_10 : f32 to vector<16x1xf32>
    %47 = arith.mulf %46, %19 : vector<16x1xf32>
    %48 = arith.subf %17, %47 : vector<16x1xf32>
    %cst_11 = arith.constant 5.000000e-01 : f32
    %49 = vector.broadcast %cst_11 : f32 to vector<16x1xf32>
    %50 = arith.mulf %49, %18 : vector<16x1xf32>
    %51 = arith.addf %16, %50 : vector<16x1xf32>
    %cst_12 = arith.constant 5.000000e-01 : f32
    %52 = vector.broadcast %cst_12 : f32 to vector<16x1xf32>
    %53 = arith.mulf %52, %19 : vector<16x1xf32>
    %54 = arith.addf %17, %53 : vector<16x1xf32>
    %cst_13 = arith.constant 5.000000e-01 : f32
    %55 = vector.broadcast %cst_13 : f32 to vector<1x128xf32>
    %56 = arith.mulf %55, %22 : vector<1x128xf32>
    %57 = arith.subf %20, %56 : vector<1x128xf32>
    %cst_14 = arith.constant 5.000000e-01 : f32
    %58 = vector.broadcast %cst_14 : f32 to vector<1x128xf32>
    %59 = arith.mulf %58, %23 : vector<1x128xf32>
    %60 = arith.subf %21, %59 : vector<1x128xf32>
    %cst_15 = arith.constant 5.000000e-01 : f32
    %61 = vector.broadcast %cst_15 : f32 to vector<1x128xf32>
    %62 = arith.mulf %61, %22 : vector<1x128xf32>
    %63 = arith.addf %20, %62 : vector<1x128xf32>
    %cst_16 = arith.constant 5.000000e-01 : f32
    %64 = vector.broadcast %cst_16 : f32 to vector<1x128xf32>
    %65 = arith.mulf %64, %23 : vector<1x128xf32>
    %66 = arith.addf %21, %65 : vector<1x128xf32>
    %67 = arith.mulf %18, %19 : vector<16x1xf32>
    %68 = arith.mulf %22, %23 : vector<1x128xf32>
    %69 = vector.broadcast %45 : vector<16x1xf32> to vector<16x128xf32>
    %70 = vector.broadcast %57 : vector<1x128xf32> to vector<16x128xf32>
    %71 = arith.maximumf %69, %70 : vector<16x128xf32>
    %72 = vector.broadcast %48 : vector<16x1xf32> to vector<16x128xf32>
    %73 = vector.broadcast %60 : vector<1x128xf32> to vector<16x128xf32>
    %74 = arith.maximumf %72, %73 : vector<16x128xf32>
    %75 = vector.broadcast %51 : vector<16x1xf32> to vector<16x128xf32>
    %76 = vector.broadcast %63 : vector<1x128xf32> to vector<16x128xf32>
    %77 = arith.minimumf %75, %76 : vector<16x128xf32>
    %78 = vector.broadcast %54 : vector<16x1xf32> to vector<16x128xf32>
    %79 = vector.broadcast %66 : vector<1x128xf32> to vector<16x128xf32>
    %80 = arith.minimumf %78, %79 : vector<16x128xf32>
    %81 = arith.subf %77, %71 : vector<16x128xf32>
    %cst_17 = arith.constant 0.000000e+00 : f32
    %82 = vector.broadcast %cst_17 : f32 to vector<16x128xf32>
    %83 = arith.maximumf %81, %82 : vector<16x128xf32>
    %84 = arith.subf %80, %74 : vector<16x128xf32>
    %cst_18 = arith.constant 0.000000e+00 : f32
    %85 = vector.broadcast %cst_18 : f32 to vector<16x128xf32>
    %86 = arith.maximumf %84, %85 : vector<16x128xf32>
    %87 = arith.mulf %83, %86 : vector<16x128xf32>
    %88 = vector.broadcast %67 : vector<16x1xf32> to vector<16x128xf32>
    %89 = vector.broadcast %68 : vector<1x128xf32> to vector<16x128xf32>
    %90 = arith.addf %88, %89 : vector<16x128xf32>
    %91 = arith.subf %90, %87 : vector<16x128xf32>
    %92 = tpu.reciprocal %91 : vector<16x128xf32> -> vector<16x128xf32>
    %93 = arith.mulf %87, %92 : vector<16x128xf32>
    %94 = vector.broadcast %45 : vector<16x1xf32> to vector<16x128xf32>
    %95 = vector.broadcast %57 : vector<1x128xf32> to vector<16x128xf32>
    %96 = arith.minimumf %94, %95 : vector<16x128xf32>
    %97 = vector.broadcast %48 : vector<16x1xf32> to vector<16x128xf32>
    %98 = vector.broadcast %60 : vector<1x128xf32> to vector<16x128xf32>
    %99 = arith.minimumf %97, %98 : vector<16x128xf32>
    %100 = vector.broadcast %51 : vector<16x1xf32> to vector<16x128xf32>
    %101 = vector.broadcast %63 : vector<1x128xf32> to vector<16x128xf32>
    %102 = arith.maximumf %100, %101 : vector<16x128xf32>
    %103 = vector.broadcast %54 : vector<16x1xf32> to vector<16x128xf32>
    %104 = vector.broadcast %66 : vector<1x128xf32> to vector<16x128xf32>
    %105 = arith.maximumf %103, %104 : vector<16x128xf32>
    %106 = arith.subf %102, %96 : vector<16x128xf32>
    %cst_19 = arith.constant 0.000000e+00 : f32
    %107 = vector.broadcast %cst_19 : f32 to vector<16x128xf32>
    %108 = arith.maximumf %106, %107 : vector<16x128xf32>
    %109 = arith.subf %105, %99 : vector<16x128xf32>
    %cst_20 = arith.constant 0.000000e+00 : f32
    %110 = vector.broadcast %cst_20 : f32 to vector<16x128xf32>
    %111 = arith.maximumf %109, %110 : vector<16x128xf32>
    %112 = arith.mulf %108, %111 : vector<16x128xf32>
    %cst_21 = arith.constant 1.000000e+00 : f32
    %113 = vector.broadcast %cst_21 : f32 to vector<16x128xf32>
    %114 = arith.subf %113, %93 : vector<16x128xf32>
    %115 = tpu.reciprocal %112 : vector<16x128xf32> -> vector<16x128xf32>
    %116 = arith.mulf %91, %115 : vector<16x128xf32>
    %117 = arith.subf %114, %116 : vector<16x128xf32>
    %cst_22 = arith.constant 1.000000e+00 : f32
    %118 = vector.broadcast %cst_22 : f32 to vector<16x128xf32>
    %119 = arith.mulf %118, %42 : vector<16x128xf32>
    %120 = arith.addf %119, %15 : vector<16x128xf32>
    %cst_23 = arith.constant 1.000000e+00 : f32
    %121 = vector.broadcast %cst_23 : f32 to vector<16x128xf32>
    %122 = arith.mulf %121, %117 : vector<16x128xf32>
    %123 = arith.addf %120, %122 : vector<16x128xf32>
    %c0_24 = arith.constant 0 : index
    %c0_25 = arith.constant 0 : index
    %124 = vector.load %arg5[%c0_24, %c0_25] : memref<16x128xf32, #tpu.memory_space<vmem>>, vector<16x128xf32>
    tpu.vector_store %arg5[%c0_24, %c0_25], %123 {strides = array<i32>} : memref<16x128xf32, #tpu.memory_space<vmem>>, vector<16x128xf32>,
    return
  }
  func.func @transform_0(%arg0: i32) -> (i32, i32) {
    %c0_i32 = arith.constant 0 : i32
    %c0_i32_0 = arith.constant 0 : i32
    return %arg0, %c0_i32 : i32, i32
  }
  func.func @transform_1(%arg0: i32) -> (i32, i32) {
    %c0_i32 = arith.constant 0 : i32
    %c0_i32_0 = arith.constant 0 : i32
    return %arg0, %c0_i32 : i32, i32
  }
  func.func @transform_2(%arg0: i32) -> (i32, i32) {
    %c0_i32 = arith.constant 0 : i32
    %c0_i32_0 = arith.constant 0 : i32
    %c0_i32_1 = arith.constant 0 : i32
    return %c0_i32, %c0_i32_0 : i32, i32
  }
  func.func @transform_3(%arg0: i32) -> (i32, i32) {
    %c0_i32 = arith.constant 0 : i32
    %c0_i32_0 = arith.constant 0 : i32
    %c0_i32_1 = arith.constant 0 : i32
    return %c0_i32, %c0_i32_0 : i32, i32
  }
  func.func @transform_4(%arg0: i32) -> (i32, i32) {
    %c0_i32 = arith.constant 0 : i32
    %c0_i32_0 = arith.constant 0 : i32
    return %arg0, %c0_i32 : i32, i32
  }
}

</mosaic_0001>

<llo_original>
// kernel: tpu_custom_call.1
$region0: #{tpu_custom_call.1}
  #allocation0 [shape = 'u32[]', space=smem, size = 0x4, offset = 0x4, fixed_abs, tag = 'smem constant byte address 0x4 - core index']
  #allocation1 [shape = 'u32[144,128]{1,0:T(1,128)}', space=vmem, size = 0x12000, scoped, tag = 'internal scratch']
  %s0 = inlined_call_operand.vmem [shape: f32[16,32], index: 0, kind: input, shape index: {}]
  %s1 = inlined_call_operand.vmem [shape: f32[16,4], index: 1, kind: input, shape index: {}]
  %s2 = inlined_call_operand.hbm [shape: bf16[32,128], index: 2, kind: input, shape index: {}]
  %s3 = inlined_call_operand.vmem [shape: f32[4,128], index: 3, kind: input, shape index: {}]
  %s4 = inlined_call_operand.hbm [shape: f32[16,128], index: 4, kind: output, shape index: {}]
  %s5 = sld [smem:[#allocation0]]
  $region30: #{tpu_custom_call.1} parent=0
    _
  %s7 = ssub.s32 1, %s5
  %s8 = scalar_select 0, %s7, %s5
  $region1: #{tpu_custom_call.1} parent=0
    #allocation2 [shape = 'u8[8192]{0}', space=vmem, size = 0x2000, scoped, tag = 'input window, operand 2, single buffered']
    #allocation3 [shape = 's32[1]{0}', space=sflag, size = 0x4, scoped, tag = 'scoped memory for tpu_custom_call.1']
    #allocation4 [shape = 's32[1]{0}', space=sflag, size = 0x4, scoped, tag = 'scoped memory for tpu_custom_call.1']
    #allocation5 [shape = 'u8[8192]{0}', space=vmem, size = 0x2000, scoped, tag = 'output window, operand 0, single buffered']
    %9 = vsyncpa [#allocation3], 0
    %10 = vsyncpa [#allocation4], 0
    // Predicated region
    $region2: #{tpu_custom_call.1} parent=1 // pred_check
      _
    $region3: #{tpu_custom_call.1} parent=1 // pred_check_branch
      %12 = sbr.rel (0) target = $region5
    $region4: #{tpu_custom_call.1} parent=1 // pred_region
      _
    $region5: #{tpu_custom_call.1} parent=1 // pred_fallthru
      _
    // Predicated region
    $region6: #{tpu_custom_call.1} parent=1 // pred_check
      _
    $region7: #{tpu_custom_call.1} parent=1 // pred_check_branch
      %14 = sbr.rel (0) target = $region9
    $region8: #{tpu_custom_call.1} parent=1 // pred_region
      _
    $region9: #{tpu_custom_call.1} parent=1 // pred_fallthru
      _
    // Predicated region
    $region10: #{tpu_custom_call.1} parent=1 // pred_check
      _
    $region11: #{tpu_custom_call.1} parent=1 // pred_check_branch
      %16 = sbr.rel (0) target = $region13
    $region12: #{tpu_custom_call.1} parent=1 // pred_region
      %s18 = ssub.s32 256, 256
      %19 = vsyncadd [#allocation3], %s18
      %s20 = sshll.u32 [#allocation2], 4
      %s21 = int_to_ptr.vmem [resolvable:$true] %s20
      %26 = dma.hbm_to_vmem [thread:$0]  %s2, 256, %s21, [#allocation3], 64, 64, 4
    $region13: #{tpu_custom_call.1} parent=1 // pred_fallthru
      _
    // Predicated region
    $region14: #{tpu_custom_call.1} parent=1 // pred_check
      _
    $region15: #{tpu_custom_call.1} parent=1 // pred_check_branch
      %28 = sbr.rel (0) target = $region17
    $region16: #{tpu_custom_call.1} parent=1 // pred_region
      _
    $region17: #{tpu_custom_call.1} parent=1 // pred_fallthru
      _
    // Predicated region
    $region18: #{tpu_custom_call.1} parent=1 // pred_check
      _
    $region19: #{tpu_custom_call.1} parent=1 // pred_check_branch
      %30 = sbr.rel (0) target = $region21
    $region20: #{tpu_custom_call.1} parent=1 // pred_region
      %31 = dma.done [#allocation3], 256
    $region21: #{tpu_custom_call.1} parent=1 // pred_fallthru
      _
    %v33 = vld [vmem:[%s0] sm:$0xff]
    %v34 = vld [vmem:[%s0 + $0x8] sm:$0xff]
    %v35 = vld [vmem:[%s1] sm:$0xff]
    %v36 = vld [vmem:[%s1 + $0x8] sm:$0xff]
    %v37 = vld [vmem:[#allocation2] sm:$0xf]
    %v38 = vld [vmem:[#allocation2 + $0x4] sm:$0xf]
    %v39 = vld [vmem:[#allocation2 + $0x8] sm:$0xf]
    %v40 = vld [vmem:[#allocation2 + $0xc] sm:$0xf]
    %v41 = vld [vmem:[%s3] sm:$0xf]
    %vm42 = vcmask 261120
    %v43 = vsel %vm42, %v33, -inf
    %44 = vmax.xlane.f32.xlu0 %v43
    %v45 = vpop.xlane.xlu0 %44
    %v46 = vsel %vm42, %v34, -inf
    %47 = vmax.xlane.f32.xlu0 %v46
    %v48 = vpop.xlane.xlu0 %47
    %v49 = vsub.f32 %v33, %v45
    %v50 = vsub.f32 %v34, %v48
    %v51 = vmul.f32 %v49, 1.442695
    %v52 = vpow.pop %v51
    %v53 = vmul.f32 %v50, 1.442695
    %v54 = vpow.pop %v53
    %v55 = vsel %vm42, %v52, 0.0
    %56 = vadd.xlane.f32.xlu0 %v55
    %v57 = vpop.xlane.xlu0 %56
    %v58 = vsel %vm42, %v54, 0.0
    %59 = vadd.xlane.f32.xlu0 %v58
    %v60 = vpop.xlane.xlu0 %59
    %v61 = vrcp.pop %v57
    %v62 = vrcp.pop %v60
    %v63 = vmul.f32 %v52, %v61
    %v64 = vmul.f32 %v54, %v62
    %v65 = vpack.c.bf16 %v64, %v63
    %v70 = vunpack.c.l.b16 %v37
    %v71 = vunpack.c.l.b16 %v38
    %v72 = vunpack.c.l.b16 %v39
    %v73 = vunpack.c.l.b16 %v40
    %v74 = vpack.c.b16 %v71, %v70
    %v75 = vpack.c.b16 %v73, %v72
    %v79 = vsel %vm42, %v65, 0
    %81 = vmatprep.subr.bf16.mxu0 0
    %82 = vmatpush1.bf16.msra.mxu0 %v74
    %83 = vmatprep.subr.bf16.mxu0 0
    %84 = vmatpush1.bf16.msra.mxu0 %v75
    %85 = vmatprep.subr.bf16.mxu0 0
    %86 = vmatpush1.bf16.msra.mxu0 0
    %87 = vmatprep.subr.bf16.mxu0 0
    %88 = vmatpush1.bf16.msra.mxu0 0
    %89 = vmatprep.subr.bf16.mxu0 0
    %90 = vmatpush1.bf16.msra.mxu0 0
    %91 = vmatprep.subr.bf16.mxu0 0
    %92 = vmatpush1.bf16.msra.mxu0 0
    %93 = vmatprep.subr.bf16.mxu0 0
    %94 = vmatpush1.bf16.msra.mxu0 0
    %95 = vmatprep.subr.bf16.mxu0 0
    %96 = vmatpush1.bf16.msra.mxu0 0
    %97 = vmatprep.subr.bf16.mxu0 0
    %98 = vmatpush1.bf16.msra.mxu0 0
    %99 = vmatprep.subr.bf16.mxu0 0
    %100 = vmatpush1.bf16.msra.mxu0 0
    %101 = vmatprep.subr.bf16.mxu0 0
    %102 = vmatpush1.bf16.msra.mxu0 0
    %103 = vmatprep.subr.bf16.mxu0 0
    %104 = vmatpush1.bf16.msra.mxu0 0
    %105 = vmatprep.subr.bf16.mxu0 0
    %106 = vmatpush1.bf16.msra.mxu0 0
    %107 = vmatprep.subr.bf16.mxu0 0
    %108 = vmatpush1.bf16.msra.mxu0 0
    %109 = vmatprep.subr.bf16.mxu0 0
    %110 = vmatpush1.bf16.msra.mxu0 0
    %111 = vmatprep.subr.bf16.mxu0 0
    %112 = vmatpush1.bf16.msra.mxu0 0
    %113 = vmatprep.mubr.bf16.mxu0 0
    %114 = vmatmul.mubr.bf16.gmra.mrb[0].mxu0 %v79
    %v115 = vpop.f32.mrb[0].mxu0
    %v116 = vadd.f32 0.0, %v115
    %v117 = vpop.f32.mrb[0].mxu0
    %v118 = vpop.f32.mrb[0].mxu0
    %v119 = vadd.f32 0.0, %v118
    %v120 = vpop.f32.mrb[0].mxu0
    %121 = vdwg.mxu0
    %123 = vset.pattern.permute.xlu0 0
    %124 = vperm.xlu0 %123, %v35
    %v125 = vpop.permute.xlu0 %124
    %128 = vset.pattern.permute.xlu0 0
    %129 = vperm.xlu0 %128, %v36
    %v130 = vpop.permute.xlu0 %129
    %v132 = vlaneseq
    %v133 = vshrl.u32 %v132, 7
    %v134 = vsub.s32 0, %v133
    %v135 = vrot.slane %v41, %v134
    %v136 = vsub.f32 %v125, %v135
    %v137 = vsub.f32 %v130, %v135
    %v138 = vand.u32 2147483647, %v136
    %v139 = vand.u32 2147483647, %v137
    %140 = vset.pattern.permute.xlu0 1
    %141 = vperm.xlu0 %140, %v35
    %v142 = vpop.permute.xlu0 %141
    %144 = vset.pattern.permute.xlu0 1
    %145 = vperm.xlu0 %144, %v36
    %v146 = vpop.permute.xlu0 %145
    %v148 = vlaneseq
    %v149 = vshrl.u32 %v148, 7
    %v150 = vsub.s32 1, %v149
    %v151 = vrot.slane %v41, %v150
    %v152 = vsub.f32 %v142, %v151
    %v153 = vsub.f32 %v146, %v151
    %v154 = vand.u32 2147483647, %v152
    %v155 = vand.u32 2147483647, %v153
    %v156 = vadd.f32 %v138, %v154
    %v157 = vadd.f32 %v139, %v155
    %158 = vset.pattern.permute.xlu0 2
    %159 = vperm.xlu0 %158, %v35
    %v160 = vpop.permute.xlu0 %159
    %162 = vset.pattern.permute.xlu0 2
    %163 = vperm.xlu0 %162, %v36
    %v164 = vpop.permute.xlu0 %163
    %v166 = vlaneseq
    %v167 = vshrl.u32 %v166, 7
    %v168 = vsub.s32 2, %v167
    %v169 = vrot.slane %v41, %v168
    %v170 = vsub.f32 %v160, %v169
    %v171 = vsub.f32 %v164, %v169
    %v172 = vand.u32 2147483647, %v170
    %v173 = vand.u32 2147483647, %v171
    %v174 = vadd.f32 %v156, %v172
    %v175 = vadd.f32 %v157, %v173
    %176 = vset.pattern.permute.xlu0 3
    %177 = vperm.xlu0 %176, %v35
    %v178 = vpop.permute.xlu0 %177
    %180 = vset.pattern.permute.xlu0 3
    %181 = vperm.xlu0 %180, %v36
    %v182 = vpop.permute.xlu0 %181
    %v184 = vlaneseq
    %v185 = vshrl.u32 %v184, 7
    %v186 = vsub.s32 3, %v185
    %v187 = vrot.slane %v41, %v186
    %v188 = vsub.f32 %v178, %v187
    %v189 = vsub.f32 %v182, %v187
    %v190 = vand.u32 2147483647, %v188
    %v191 = vand.u32 2147483647, %v189
    %v192 = vadd.f32 %v174, %v190
    %v193 = vadd.f32 %v175, %v191
    %v194 = vmul.f32 %v35, 0.5
    %v195 = vmul.f32 %v36, 0.5
    %198 = vrot.lane.b32.xlu0 %v194, 126
    %v199 = vpop.permute.xlu0 %198
    %200 = vrot.lane.b32.xlu0 %v195, 126
    %v201 = vpop.permute.xlu0 %200
    %v204 = vsub.f32 %v35, %v199
    %v205 = vsub.f32 %v36, %v201
    %v206 = vadd.f32 %v35, %v199
    %v207 = vadd.f32 %v36, %v201
    %v208 = vmul.f32 %v41, 0.5
    %v210 = vrot.slane %v208, 2
    %v212 = vsub.f32 %v41, %v210
    %v213 = vadd.f32 %v41, %v210
    %214 = vrot.lane.b32.xlu0 %v35, 127
    %v215 = vpop.permute.xlu0 %214
    %216 = vrot.lane.b32.xlu0 %v36, 127
    %v217 = vpop.permute.xlu0 %216
    %v220 = vmul.f32 %v35, %v215
    %v221 = vmul.f32 %v36, %v217
    %v223 = vrot.slane %v41, 1
    %v225 = vmul.f32 %v41, %v223
    %227 = vset.pattern.permute.xlu0 0
    %228 = vperm.xlu0 %227, %v204
    %v229 = vpop.permute.xlu0 %228
    %232 = vset.pattern.permute.xlu0 0
    %233 = vperm.xlu0 %232, %v205
    %v234 = vpop.permute.xlu0 %233
    %v236 = vlaneseq
    %v237 = vshrl.u32 %v236, 7
    %v238 = vsub.s32 0, %v237
    %v239 = vrot.slane %v212, %v238
    %v240 = vmax.f32 %v229, %v239
    %v241 = vmax.f32 %v234, %v239
    %242 = vset.pattern.permute.xlu0 1
    %243 = vperm.xlu0 %242, %v204
    %v244 = vpop.permute.xlu0 %243
    %246 = vset.pattern.permute.xlu0 1
    %247 = vperm.xlu0 %246, %v205
    %v248 = vpop.permute.xlu0 %247
    %v250 = vlaneseq
    %v251 = vshrl.u32 %v250, 7
    %v252 = vsub.s32 1, %v251
    %v253 = vrot.slane %v212, %v252
    %v254 = vmax.f32 %v244, %v253
    %v255 = vmax.f32 %v248, %v253
    %257 = vset.pattern.permute.xlu0 0
    %258 = vperm.xlu0 %257, %v206
    %v259 = vpop.permute.xlu0 %258
    %262 = vset.pattern.permute.xlu0 0
    %263 = vperm.xlu0 %262, %v207
    %v264 = vpop.permute.xlu0 %263
    %v266 = vlaneseq
    %v267 = vshrl.u32 %v266, 7
    %v268 = vsub.s32 0, %v267
    %v269 = vrot.slane %v213, %v268
    %v270 = vmin.f32 %v259, %v269
    %v271 = vmin.f32 %v264, %v269
    %272 = vset.pattern.permute.xlu0 1
    %273 = vperm.xlu0 %272, %v206
    %v274 = vpop.permute.xlu0 %273
    %276 = vset.pattern.permute.xlu0 1
    %277 = vperm.xlu0 %276, %v207
    %v278 = vpop.permute.xlu0 %277
    %v280 = vlaneseq
    %v281 = vshrl.u32 %v280, 7
    %v282 = vsub.s32 1, %v281
    %v283 = vrot.slane %v213, %v282
    %v284 = vmin.f32 %v274, %v283
    %v285 = vmin.f32 %v278, %v283
    %v286 = vsub.f32 %v270, %v240
    %v287 = vsub.f32 %v271, %v241
    %v288 = vmax.f32 %v286, 0.0
    %v289 = vmax.f32 %v287, 0.0
    %v290 = vsub.f32 %v284, %v254
    %v291 = vsub.f32 %v285, %v255
    %v292 = vmax.f32 %v290, 0.0
    %v293 = vmax.f32 %v291, 0.0
    %v294 = vmul.f32 %v288, %v292
    %v295 = vmul.f32 %v289, %v293
    %297 = vset.pattern.permute.xlu0 2
    %298 = vperm.xlu0 %297, %v220
    %v299 = vpop.permute.xlu0 %298
    %302 = vset.pattern.permute.xlu0 2
    %303 = vperm.xlu0 %302, %v221
    %v304 = vpop.permute.xlu0 %303
    %v306 = vlaneseq
    %v307 = vshrl.u32 %v306, 7
    %v308 = vsub.s32 2, %v307
    %v309 = vrot.slane %v225, %v308
    %v310 = vadd.f32 %v299, %v309
    %v311 = vadd.f32 %v304, %v309
    %v312 = vsub.f32 %v310, %v294
    %v313 = vsub.f32 %v311, %v295
    %v314 = vrcp.pop %v312
    %v315 = vrcp.pop %v313
    %v316 = vmul.f32 %v294, %v314
    %v317 = vmul.f32 %v295, %v315
    %v318 = vmin.f32 %v229, %v239
    %v319 = vmin.f32 %v234, %v239
    %v320 = vmin.f32 %v244, %v253
    %v321 = vmin.f32 %v248, %v253
    %v322 = vmax.f32 %v259, %v269
    %v323 = vmax.f32 %v264, %v269
    %v324 = vmax.f32 %v274, %v283
    %v325 = vmax.f32 %v278, %v283
    %v326 = vsub.f32 %v322, %v318
    %v327 = vsub.f32 %v323, %v319
    %v328 = vmax.f32 %v326, 0.0
    %v329 = vmax.f32 %v327, 0.0
    %v330 = vsub.f32 %v324, %v320
    %v331 = vsub.f32 %v325, %v321
    %v332 = vmax.f32 %v330, 0.0
    %v333 = vmax.f32 %v331, 0.0
    %v334 = vmul.f32 %v328, %v332
    %v335 = vmul.f32 %v329, %v333
    %v336 = vsub.f32 1.0, %v316
    %v337 = vsub.f32 1.0, %v317
    %v338 = vrcp.pop %v334
    %v339 = vrcp.pop %v335
    %v340 = vmul.f32 %v312, %v338
    %v341 = vmul.f32 %v313, %v339
    %v342 = vsub.f32 %v336, %v340
    %v343 = vsub.f32 %v337, %v341
    %v344 = vadd.f32 %v192, %v116
    %v345 = vadd.f32 %v193, %v119
    %v346 = vadd.f32 %v344, %v342
    %v347 = vadd.f32 %v345, %v343
    %348 = vst [vmem:[#allocation5] sm:$0xff] %v346
    %349 = vst [vmem:[#allocation5 + $0x8] sm:$0xff] %v347
    // Predicated region
    $region22: #{tpu_custom_call.1} parent=1 // pred_check
      _
    $region23: #{tpu_custom_call.1} parent=1 // pred_check_branch
      %351 = sbr.rel (0) target = $region25
    $region24: #{tpu_custom_call.1} parent=1 // pred_region
      %s353 = ssub.s32 256, 256
      %354 = vsyncadd [#allocation4], %s353
      %s355 = sshll.u32 [#allocation5], 4
      %s356 = int_to_ptr.vmem [resolvable:$true] %s355
      %361 = dma.vmem_to_hbm [thread:$0]  %s356, 256, %s4, [#allocation4], 128, 128, 8
    $region25: #{tpu_custom_call.1} parent=1 // pred_fallthru
      _
    // Predicated region
    $region26: #{tpu_custom_call.1} parent=1 // pred_check
      _
    $region27: #{tpu_custom_call.1} parent=1 // pred_check_branch
      %363 = sbr.rel (0) target = $region29
    $region28: #{tpu_custom_call.1} parent=1 // pred_region
      %364 = dma.done [#allocation4], 256
    $region29: #{tpu_custom_call.1} parent=1 // pred_fallthru
      _
    %365 = vsyncpa [#allocation3], 1
    %366 = vsyncpa [#allocation4], 1

</llo_original>
